<compile_context>
chip_gen: v5e
topology: v5e:2x2
jax: 0.10.0
libtpu: 0.0.40
codegen_flags: <defaults>
</compile_context>

<pallas_src>
import functools
import math

import jax
import jax.numpy as jnp
from jax.experimental import pallas as pl
from jax.experimental.pallas import tpu as pltpu

_LANE = 128
_SUBLANE = 8
_MAX_UNROLL_C = 64                 # unroll class loop below this many channels
_WORK_BUDGET = 3 * 1024 * 1024     # target in-kernel f32 working-set bytes


@functools.lru_cache(maxsize=1)
def _vmem_budgets():
    """(combined pred+label block budget, vmem_limit_bytes), chip-aware.

    v5e/v6e: 128 MiB physical VMEM -> generous blocks.  v7x: 64 MiB per
    TensorCore -> keep 2 inputs x 2 pipeline buffers around 24 MiB.  Unknown
    hardware falls back to the conservative (v7x) numbers.
    """
    vmem_bytes = 0
    try:
        info = pltpu.get_tpu_info()
        vmem_bytes = int(getattr(info, "vmem_capacity_bytes", 0) or 0)
    except Exception:
        vmem_bytes = 0
    if vmem_bytes >= 96 * 1024 * 1024:            # v5e / v6e (128 MiB)
        return 12 * 1024 * 1024, 64 * 1024 * 1024
    return 6 * 1024 * 1024, 44 * 1024 * 1024      # v7x (64 MiB/TC) or unknown


# ---------------------------------------------------------------------------
# Shared per-tile math (pure elementwise VPU/EUP work, any tile shape).
# ---------------------------------------------------------------------------
def _ce_unrolled(rows, lrows, lbl_idx, ignore_index, exact_one_hot):
    """Elementwise CE from C cached f32 logit tiles (each loaded once).

    rows    : list of C f32 tiles (one per class, identical shape)
    lrows   : list of C one-hot label tiles (f32), or None
    lbl_idx : int32 index-label tile, or None
    """
    C = len(rows)
    m = rows[0]
    for c in range(1, C):
        m = jnp.maximum(m, rows[c])
    z = jnp.exp(rows[0] - m)
    for c in range(1, C):
        z = z + jnp.exp(rows[c] - m)
    lse = m + jnp.log(z)

    if lrows is not None:
        if exact_one_hot:
            # strict one-hot: picked = sum_c label_c * logit_c
            picked = lrows[0] * rows[0]
            for c in range(1, C):
                picked = picked + lrows[c] * rows[c]
        else:
            # running argmax (first max wins ties) == torch.argmax semantics
            best = lrows[0]
            picked = rows[0]
            for c in range(1, C):
                take = lrows[c] > best
                best = jnp.where(take, lrows[c], best)
                picked = jnp.where(take, rows[c], picked)
        return lse - picked

    picked = rows[0]
    for c in range(1, C):
        picked = jnp.where(lbl_idx == c, rows[c], picked)
    le = lse - picked
    return jnp.where(lbl_idx != ignore_index, le, 0.0)   # ignored -> 0


# ---------------------------------------------------------------------------
# Fast path: S % 128 == 0, dense (TR, 128) tiles per class row.
# ---------------------------------------------------------------------------
def _make_ce_kernel_4d(Nb, C, R, TR, one_hot, want_elem, ignore_index,
                       exact_one_hot):
    unroll = C <= _MAX_UNROLL_C
    partial_tile = (R % TR) != 0

    def kernel(pred_ref, label_ref, out_ref):
        # pred_ref : (Nb, C, TR, 128)
        # label_ref: (Nb, C, TR, 128) one-hot  or  (Nb, 1, TR, 128) indices
        # out_ref  : (Nb, 1, TR, 128)  elementwise loss   (reduction == 'none')
        #            (1, 1, 128)       per-lane partials  (reduction != 'none')
        acc = None
        for nb in range(Nb):
            if unroll:
                rows = [pred_ref[nb, c].astype(jnp.float32) for c in range(C)]
                if one_hot:
                    lrows = [label_ref[nb, c].astype(jnp.float32)
                             for c in range(C)]
                    le = _ce_unrolled(rows, lrows, None, ignore_index,
                                      exact_one_hot)
                else:
                    lbl = label_ref[nb, 0].astype(jnp.int32)
                    le = _ce_unrolled(rows, None, lbl, ignore_index,
                                      exact_one_hot)
            else:
                x = pred_ref[nb].astype(jnp.float32)          # (C, TR, 128)
                m = jnp.max(x, axis=0)
                lse = m + jnp.log(jnp.sum(jnp.exp(x - m[None]), axis=0))
                if one_hot:
                    # TODO(synk): exact only for strict one-hot labels.
                    lab = label_ref[nb].astype(jnp.float32)
                    le = lse - jnp.sum(lab * x, axis=0)
                else:
                    lbl = label_ref[nb, 0].astype(jnp.int32)  # (TR, 128)
                    cls = jax.lax.broadcasted_iota(jnp.int32, x.shape, 0)
                    picked = jnp.sum(jnp.where(cls == lbl[None], x, 0.0),
                                     axis=0)
                    le = jnp.where(lbl != ignore_index, lse - picked, 0.0)

            if want_elem:
                out_ref[nb, 0] = le
            else:
                if partial_tile:       # mask rows past R in the last tile
                    row = jax.lax.broadcasted_iota(jnp.int32, le.shape, 0)
                    le = jnp.where(pl.program_id(1) * TR + row < R, le, 0.0)
                part = jnp.sum(le, axis=0, keepdims=True)     # (1, 128)
                acc = part if acc is None else acc + part

        if not want_elem:
            out_ref[0] = acc

    return kernel


# ---------------------------------------------------------------------------
# Fallback path: S not a multiple of 128 — (1, TS) lane rows (previous layout).
# ---------------------------------------------------------------------------
def _make_ce_kernel_3d(C, S, TS, one_hot, want_elem, ignore_index,
                       exact_one_hot):
    unroll = C <= _MAX_UNROLL_C
    partial_tile = (S % TS) != 0

    def kernel(pred_ref, label_ref, out_ref):
        # pred_ref : (1, C, TS); label_ref: (1, C or 1, TS)
        # out_ref  : (1, 1, TS) ('none')  /  (1, 1, 128) ('mean'/'sum')
        if unroll:
            rows = [pred_ref[0, c:c + 1, :].astype(jnp.float32)
                    for c in range(C)]
            if one_hot:
                lrows = [label_ref[0, c:c + 1, :].astype(jnp.float32)
                         for c in range(C)]
                le = _ce_unrolled(rows, lrows, None, ignore_index,
                                  exact_one_hot)
            else:
                lbl = label_ref[0, 0:1, :].astype(jnp.int32)
                le = _ce_unrolled(rows, None, lbl, ignore_index,
                                  exact_one_hot)
        else:
            x = pred_ref[0].astype(jnp.float32)               # (C, TS)
            m = jnp.max(x, axis=0, keepdims=True)
            lse = m + jnp.log(jnp.sum(jnp.exp(x - m), axis=0, keepdims=True))
            if one_hot:
                # TODO(synk): exact only for strict one-hot labels.
                lab = label_ref[0].astype(jnp.float32)
                le = lse - jnp.sum(lab * x, axis=0, keepdims=True)
            else:
                lbl = label_ref[0, 0:1, :].astype(jnp.int32)
                cls = jax.lax.broadcasted_iota(jnp.int32, (C, TS), 0)
                picked = jnp.sum(jnp.where(cls == lbl, x, 0.0),
                                 axis=0, keepdims=True)
                le = jnp.where(lbl != ignore_index, lse - picked, 0.0)

        if want_elem:
            out_ref[0] = le
        else:
            if partial_tile:           # mask columns past S in the last tile
                col = jax.lax.broadcasted_iota(jnp.int32, (1, TS), 1)
                le = jnp.where(pl.program_id(1) * TS + col < S, le, 0.0)
            out_ref[0] = jnp.full((1, _LANE), jnp.sum(le), dtype=jnp.float32)

    return kernel


# ---------------------------------------------------------------------------
# Tile-size heuristics (HBM block budget + in-kernel f32 working-set budget).
# ---------------------------------------------------------------------------
def _pick_tile_rows(R, C, pred_item, lbl_c, lbl_item, block_budget):
    hbm_per_row = (C * pred_item + lbl_c * lbl_item + 4) * _LANE
    f32_per_row = (C + 8) * 4 * _LANE
    cap = min(block_budget // max(hbm_per_row, 1),
              _WORK_BUDGET // max(f32_per_row, 1))
    cap = max(_SUBLANE, cap)
    if R <= cap:
        return R                                    # full extent: allowed
    return max(_SUBLANE, (cap // _SUBLANE) * _SUBLANE)


def _pick_tile_cols(S, C, pred_item, lbl_c, lbl_item, block_budget):
    per_col = C * pred_item + lbl_c * lbl_item + 4
    f32_per_col = (C + 8) * 4
    cap = min(block_budget // max(per_col, 1),
              _WORK_BUDGET // max(f32_per_col, 1))
    cap = max(_LANE, cap)
    if S <= cap:
        return S                                    # full extent: allowed
    return max(_LANE, (cap // _LANE) * _LANE)


# ---------------------------------------------------------------------------
# Wrapper (module forward, weight=None path).
# ---------------------------------------------------------------------------
@functools.partial(jax.jit,
                   static_argnames=("reduction", "ignore_index",
                                    "exact_one_hot"))
def cross_entropy_loss_forward(cls_score, label, weight=None, reduction="mean",
                               avg_factor=None, loss_weight=1.0,
                               ignore_index=-100, exact_one_hot=True):
    """Forward of CrossEntropyLoss(sigmoid=False, softmax=False).

    cls_score: (N, C, *spatial) logits (any float dtype, cast in-kernel)
    label    : (N, C, *spatial) one-hot  OR  (N, 1, *spatial) index labels
    """
    if weight is not None:
        # TODO(synk): sample/element-wise weight not implemented (default None).
        raise NotImplementedError("weight is not supported in the Pallas port")
    assert reduction in ("none", "mean", "sum")

    N, C = cls_score.shape[0], cls_score.shape[1]
    spatial = cls_score.shape[2:]
    S = int(math.prod(spatial)) if spatial else 1
    M = N * S

    one_hot = label.shape[1] == C        # module: argmax branch vs squeeze
    lbl_c = C if one_hot else 1
    want_elem = reduction == "none"

    block_budget, vmem_limit = _vmem_budgets()
    pred_item = jnp.dtype(cls_score.dtype).itemsize
    lbl_item = jnp.dtype(label.dtype).itemsize

    use_4d = (S % _LANE == 0) and (S >= _LANE)

    if use_4d:
        # ---- dense (TR, 128) tiles per class row: full sublane utilization ----
        R = S // _LANE
        pred_a = cls_score.reshape(N, C, R, _LANE)      # free, contiguous
        lbl_a = label.reshape(N, lbl_c, R, _LANE)

        TR = _pick_tile_rows(R, C, pred_item, lbl_c, lbl_item, block_budget)
        T = (R + TR - 1) // TR

        # Block several samples per grid step when one sample's spatial extent
        # no longer amortizes the ~0.35us per-grid-step pipeline overhead.
        Nb = 1
        if T == 1 and N > 1:
            hbm_per_sample = (C * pred_item + lbl_c * lbl_item + 4) * _LANE * R
            work_per_sample = (C + 8) * 4 * _LANE * R
            max_nb = min(block_budget // max(hbm_per_sample, 1),
                         _WORK_BUDGET // max(work_per_sample, 1), 8)
            for d in range(min(max(max_nb, 1), N), 0, -1):
                if N % d == 0:
                    Nb = d
                    break
        NG = N // Nb
        grid = (NG, T)

        in_specs = [
            pl.BlockSpec((Nb, C, TR, _LANE), lambda n, t: (n, 0, t, 0)),
            pl.BlockSpec((Nb, lbl_c, TR, _LANE), lambda n, t: (n, 0, t, 0)),
        ]
        if want_elem:
            out_shape = jax.ShapeDtypeStruct((N, 1, R, _LANE), jnp.float32)
            out_specs = pl.BlockSpec((Nb, 1, TR, _LANE),
                                     lambda n, t: (n, 0, t, 0))
        else:
            out_shape = jax.ShapeDtypeStruct((NG, 1, T * _LANE), jnp.float32)
            out_specs = pl.BlockSpec((1, 1, _LANE), lambda n, t: (n, 0, t))

        kernel = _make_ce_kernel_4d(Nb, C, R, TR, one_hot, want_elem,
                                    ignore_index, exact_one_hot)
    else:
        # ---- fallback for spatial extents not a multiple of 128 ----
        pred_a = cls_score.reshape(N, C, S)
        lbl_a = label.reshape(N, lbl_c, S)

        TS = _pick_tile_cols(S, C, pred_item, lbl_c, lbl_item, block_budget)
        T = (S + TS - 1) // TS
        grid = (N, T)

        in_specs = [
            pl.BlockSpec((1, C, TS), lambda n, t: (n, 0, t)),
            pl.BlockSpec((1, lbl_c, TS), lambda n, t: (n, 0, t)),
        ]
        if want_elem:
            out_shape = jax.ShapeDtypeStruct((N, 1, S), jnp.float32)
            out_specs = pl.BlockSpec((1, 1, TS), lambda n, t: (n, 0, t))
        else:
            out_shape = jax.ShapeDtypeStruct((N, 1, T * _LANE), jnp.float32)
            out_specs = pl.BlockSpec((1, 1, _LANE), lambda n, t: (n, 0, t))

        kernel = _make_ce_kernel_3d(C, S, TS, one_hot, want_elem,
                                    ignore_index, exact_one_hot)

    cost = pl.CostEstimate(
        flops=6 * M * C,
        transcendentals=M * (C + 1),
        bytes_accessed=(pred_a.size * pred_item + lbl_a.size * lbl_item
                        + math.prod(out_shape.shape) * 4),
    )

    out = pl.pallas_call(
        kernel,
        grid=grid,
        in_specs=in_specs,
        out_specs=out_specs,
        out_shape=out_shape,
        compiler_params=pltpu.CompilerParams(
            dimension_semantics=("parallel", "parallel"),
            vmem_limit_bytes=vmem_limit,
        ),
        cost_estimate=cost,
    )(pred_a, lbl_a)

    # ---- weight_reduce_loss (weight=None path) ----
    if reduction == "none":
        loss = out.reshape((N,) + spatial)
    else:
        if use_4d:
            total = jnp.sum(out)                    # per-lane partial sums
        else:
            total = jnp.sum(out[:, 0, ::_LANE])     # per-tile scalar sums
        if reduction == "sum":
            if avg_factor is not None:
                raise ValueError(
                    'avg_factor can not be used with reduction="sum"')
            loss = total
        else:  # 'mean'
            denom = avg_factor if avg_factor is not None else jnp.float32(M)
            loss = total / denom

    return loss_weight * loss


# ---------------------------------------------------------------------------
# Pure-JAX reference mirroring the PyTorch module forward.
# ---------------------------------------------------------------------------
def _reference(cls_score, label, reduction="mean"):
    C = cls_score.shape[1]
    if label.shape[1] == C:
        idx = jnp.argmax(label, axis=1)
    else:
        idx = jnp.squeeze(label, axis=1)
    idx = idx.astype(jnp.int32)
    logits = jnp.moveaxis(cls_score, 1, -1).astype(jnp.float32)
    logp = jax.nn.log_softmax(logits, axis=-1)
    ce = -jnp.take_along_axis(logp, idx[..., None], axis=-1)[..., 0]
    if reduction == "mean":
        return ce.mean()
    if reduction == "sum":
        return ce.sum()
    return ce


if __name__ == "__main__":
    key = jax.random.PRNGKey(0)
    k1, k2, k3, k4 = jax.random.split(key, 4)

    # ======== fast 4-D path (S = 256, multiple of 128) ========
    N, C, H, W = 2, 4, 16, 16
    cls_score = jax.random.normal(k1, (N, C, H, W), dtype=jnp.float32)
    gt = jax.random.randint(k2, (N, H, W), 0, C)

    # one-hot label path (n_target_ch == n_pred_ch -> argmax branch)
    label_1h = jax.nn.one_hot(gt, C, axis=1, dtype=jnp.float32)

    loss_mean = jax.block_until_ready(
        cross_entropy_loss_forward(cls_score, label_1h, reduction="mean"))
    ref_mean = jax.block_until_ready(_reference(cls_score, label_1h, "mean"))
    assert jnp.isfinite(loss_mean), "loss is not finite"
    assert jnp.allclose(loss_mean, ref_mean, rtol=1e-5, atol=1e-5), \
        (loss_mean, ref_mean)

    loss_sum = jax.block_until_ready(
        cross_entropy_loss_forward(cls_score, label_1h, reduction="sum"))
    ref_sum = jax.block_until_ready(_reference(cls_score, label_1h, "sum"))
    assert jnp.allclose(loss_sum, ref_sum, rtol=1e-5, atol=1e-4), \
        (loss_sum, ref_sum)

    loss_none = jax.block_until_ready(
        cross_entropy_loss_forward(cls_score, label_1h, reduction="none"))
    ref_none = jax.block_until_ready(_reference(cls_score, label_1h, "none"))
    assert loss_none.shape == (N, H, W)
    assert jnp.allclose(loss_none, ref_none, rtol=1e-5, atol=1e-5)

    # index label path (n_target_ch == 1 -> squeeze branch)
    label_idx = gt[:, None].astype(jnp.int32)
    loss_idx = jax.block_until_ready(
        cross_entropy_loss_forward(cls_score, label_idx, reduction="mean"))
    assert jnp.allclose(loss_idx, ref_mean, rtol=1e-5, atol=1e-5), \
        (loss_idx, ref_mean)

    # ======== fallback 3-D path (S = 130, not a multiple of 128) ========
    H2, W2 = 10, 13
    cls2 = jax.random.normal(k3, (N, C, H2, W2), dtype=jnp.float32)
    gt2 = jax.random.randint(k4, (N, H2, W2), 0, C)
    label2_1h = jax.nn.one_hot(gt2, C, axis=1, dtype=jnp.float32)

    l2_mean = jax.block_until_ready(
        cross_entropy_loss_forward(cls2, label2_1h, reduction="mean"))
    r2_mean = jax.block_until_ready(_reference(cls2, label2_1h, "mean"))
    assert jnp.allclose(l2_mean, r2_mean, rtol=1e-5, atol=1e-5), \
        (l2_mean, r2_mean)

    l2_none = jax.block_until_ready(
        cross_entropy_loss_forward(cls2, label2_1h, reduction="none"))
    r2_none = jax.block_until_ready(_reference(cls2, label2_1h, "none"))
    assert l2_none.shape == (N, H2, W2)
    assert jnp.allclose(l2_none, r2_none, rtol=1e-5, atol=1e-5)

    l2_idx = jax.block_until_ready(
        cross_entropy_loss_forward(cls2, gt2[:, None].astype(jnp.int32),
                                   reduction="mean"))
    assert jnp.allclose(l2_idx, r2_mean, rtol=1e-5, atol=1e-5), \
        (l2_idx, r2_mean)

    print("KERNEL_OK")
</pallas_src>

<mosaic_0001>
module attributes {stable_mosaic.version = 11 : i64} {
  func.func @kernel(%arg0: i32, %arg1: i32, %arg2: memref<2x4x2x128xf32, #tpu.memory_space<vmem>>, %arg3: memref<2x4x2x128xf32, #tpu.memory_space<vmem>>, %arg4: memref<1x1x128xf32, #tpu.memory_space<vmem>>) attributes {dimension_semantics = [#tpu.dimension_semantics<parallel>, #tpu.dimension_semantics<parallel>], iteration_bounds = array<i64: 1, 1>, scalar_prefetch = 0 : i64, scratch_operands = 0 : i64, tpu.core_type = #tpu.core_type<tc>, window_params = [{transform_indices = @transform_0, window_bounds = array<i64: 2, 4, 2, 128>}, {transform_indices = @transform_1, window_bounds = array<i64: 2, 4, 2, 128>}, {transform_indices = @transform_2, window_bounds = array<i64: 1, 1, 128>}]} {
    %c0 = arith.constant 0 : index
    %c0_0 = arith.constant 0 : index
    %c0_1 = arith.constant 0 : index
    %c0_2 = arith.constant 0 : index
    %0 = vector.load %arg2[%c0, %c0_0, %c0_1, %c0_2] : memref<2x4x2x128xf32, #tpu.memory_space<vmem>>, vector<1x1x2x128xf32>
    %1 = vector.shape_cast %0 : vector<1x1x2x128xf32> to vector<2x128xf32>
    %c0_3 = arith.constant 0 : index
    %c1 = arith.constant 1 : index
    %c0_4 = arith.constant 0 : index
    %c0_5 = arith.constant 0 : index
    %2 = vector.load %arg2[%c0_3, %c1, %c0_4, %c0_5] : memref<2x4x2x128xf32, #tpu.memory_space<vmem>>, vector<1x1x2x128xf32>
    %3 = vector.shape_cast %2 : vector<1x1x2x128xf32> to vector<2x128xf32>
    %c0_6 = arith.constant 0 : index
    %c2 = arith.constant 2 : index
    %c0_7 = arith.constant 0 : index
    %c0_8 = arith.constant 0 : index
    %4 = vector.load %arg2[%c0_6, %c2, %c0_7, %c0_8] : memref<2x4x2x128xf32, #tpu.memory_space<vmem>>, vector<1x1x2x128xf32>
    %5 = vector.shape_cast %4 : vector<1x1x2x128xf32> to vector<2x128xf32>
    %c0_9 = arith.constant 0 : index
    %c3 = arith.constant 3 : index
    %c0_10 = arith.constant 0 : index
    %c0_11 = arith.constant 0 : index
    %6 = vector.load %arg2[%c0_9, %c3, %c0_10, %c0_11] : memref<2x4x2x128xf32, #tpu.memory_space<vmem>>, vector<1x1x2x128xf32>
    %7 = vector.shape_cast %6 : vector<1x1x2x128xf32> to vector<2x128xf32>
    %c0_12 = arith.constant 0 : index
    %c0_13 = arith.constant 0 : index
    %c0_14 = arith.constant 0 : index
    %c0_15 = arith.constant 0 : index
    %8 = vector.load %arg3[%c0_12, %c0_13, %c0_14, %c0_15] : memref<2x4x2x128xf32, #tpu.memory_space<vmem>>, vector<1x1x2x128xf32>
    %9 = vector.shape_cast %8 : vector<1x1x2x128xf32> to vector<2x128xf32>
    %c0_16 = arith.constant 0 : index
    %c1_17 = arith.constant 1 : index
    %c0_18 = arith.constant 0 : index
    %c0_19 = arith.constant 0 : index
    %10 = vector.load %arg3[%c0_16, %c1_17, %c0_18, %c0_19] : memref<2x4x2x128xf32, #tpu.memory_space<vmem>>, vector<1x1x2x128xf32>
    %11 = vector.shape_cast %10 : vector<1x1x2x128xf32> to vector<2x128xf32>
    %c0_20 = arith.constant 0 : index
    %c2_21 = arith.constant 2 : index
    %c0_22 = arith.constant 0 : index
    %c0_23 = arith.constant 0 : index
    %12 = vector.load %arg3[%c0_20, %c2_21, %c0_22, %c0_23] : memref<2x4x2x128xf32, #tpu.memory_space<vmem>>, vector<1x1x2x128xf32>
    %13 = vector.shape_cast %12 : vector<1x1x2x128xf32> to vector<2x128xf32>
    %c0_24 = arith.constant 0 : index
    %c3_25 = arith.constant 3 : index
    %c0_26 = arith.constant 0 : index
    %c0_27 = arith.constant 0 : index
    %14 = vector.load %arg3[%c0_24, %c3_25, %c0_26, %c0_27] : memref<2x4x2x128xf32, #tpu.memory_space<vmem>>, vector<1x1x2x128xf32>
    %15 = vector.shape_cast %14 : vector<1x1x2x128xf32> to vector<2x128xf32>
    %16 = arith.maximumf %1, %3 : vector<2x128xf32>
    %17 = arith.maximumf %16, %5 : vector<2x128xf32>
    %18 = arith.maximumf %17, %7 : vector<2x128xf32>
    %19 = arith.subf %1, %18 : vector<2x128xf32>
    %20 = math.exp %19 : vector<2x128xf32>
    %21 = arith.subf %3, %18 : vector<2x128xf32>
    %22 = math.exp %21 : vector<2x128xf32>
    %23 = arith.addf %20, %22 : vector<2x128xf32>
    %24 = arith.subf %5, %18 : vector<2x128xf32>
    %25 = math.exp %24 : vector<2x128xf32>
    %26 = arith.addf %23, %25 : vector<2x128xf32>
    %27 = arith.subf %7, %18 : vector<2x128xf32>
    %28 = math.exp %27 : vector<2x128xf32>
    %29 = arith.addf %26, %28 : vector<2x128xf32>
    %30 = math.log %29 : vector<2x128xf32>
    %31 = arith.addf %18, %30 : vector<2x128xf32>
    %32 = arith.mulf %9, %1 : vector<2x128xf32>
    %33 = arith.mulf %11, %3 : vector<2x128xf32>
    %34 = arith.addf %32, %33 : vector<2x128xf32>
    %35 = arith.mulf %13, %5 : vector<2x128xf32>
    %36 = arith.addf %34, %35 : vector<2x128xf32>
    %37 = arith.mulf %15, %7 : vector<2x128xf32>
    %38 = arith.addf %36, %37 : vector<2x128xf32>
    %39 = arith.subf %31, %38 : vector<2x128xf32>
    %cst = arith.constant dense<0.000000e+00> : vector<128xf32>
    %40 = vector.multi_reduction <add>, %39, %cst [0] : vector<2x128xf32> to vector<128xf32>
    %41 = vector.shape_cast %40 : vector<128xf32> to vector<1x128xf32>
    %c1_28 = arith.constant 1 : index
    %c0_29 = arith.constant 0 : index
    %c0_30 = arith.constant 0 : index
    %c0_31 = arith.constant 0 : index
    %42 = vector.load %arg2[%c1_28, %c0_29, %c0_30, %c0_31] : memref<2x4x2x128xf32, #tpu.memory_space<vmem>>, vector<1x1x2x128xf32>
    %43 = vector.shape_cast %42 : vector<1x1x2x128xf32> to vector<2x128xf32>
    %c1_32 = arith.constant 1 : index
    %c1_33 = arith.constant 1 : index
    %c0_34 = arith.constant 0 : index
    %c0_35 = arith.constant 0 : index
    %44 = vector.load %arg2[%c1_32, %c1_33, %c0_34, %c0_35] : memref<2x4x2x128xf32, #tpu.memory_space<vmem>>, vector<1x1x2x128xf32>
    %45 = vector.shape_cast %44 : vector<1x1x2x128xf32> to vector<2x128xf32>
    %c1_36 = arith.constant 1 : index
    %c2_37 = arith.constant 2 : index
    %c0_38 = arith.constant 0 : index
    %c0_39 = arith.constant 0 : index
    %46 = vector.load %arg2[%c1_36, %c2_37, %c0_38, %c0_39] : memref<2x4x2x128xf32, #tpu.memory_space<vmem>>, vector<1x1x2x128xf32>
    %47 = vector.shape_cast %46 : vector<1x1x2x128xf32> to vector<2x128xf32>
    %c1_40 = arith.constant 1 : index
    %c3_41 = arith.constant 3 : index
    %c0_42 = arith.constant 0 : index
    %c0_43 = arith.constant 0 : index
    %48 = vector.load %arg2[%c1_40, %c3_41, %c0_42, %c0_43] : memref<2x4x2x128xf32, #tpu.memory_space<vmem>>, vector<1x1x2x128xf32>
    %49 = vector.shape_cast %48 : vector<1x1x2x128xf32> to vector<2x128xf32>
    %c1_44 = arith.constant 1 : index
    %c0_45 = arith.constant 0 : index
    %c0_46 = arith.constant 0 : index
    %c0_47 = arith.constant 0 : index
    %50 = vector.load %arg3[%c1_44, %c0_45, %c0_46, %c0_47] : memref<2x4x2x128xf32, #tpu.memory_space<vmem>>, vector<1x1x2x128xf32>
    %51 = vector.shape_cast %50 : vector<1x1x2x128xf32> to vector<2x128xf32>
    %c1_48 = arith.constant 1 : index
    %c1_49 = arith.constant 1 : index
    %c0_50 = arith.constant 0 : index
    %c0_51 = arith.constant 0 : index
    %52 = vector.load %arg3[%c1_48, %c1_49, %c0_50, %c0_51] : memref<2x4x2x128xf32, #tpu.memory_space<vmem>>, vector<1x1x2x128xf32>
    %53 = vector.shape_cast %52 : vector<1x1x2x128xf32> to vector<2x128xf32>
    %c1_52 = arith.constant 1 : index
    %c2_53 = arith.constant 2 : index
    %c0_54 = arith.constant 0 : index
    %c0_55 = arith.constant 0 : index
    %54 = vector.load %arg3[%c1_52, %c2_53, %c0_54, %c0_55] : memref<2x4x2x128xf32, #tpu.memory_space<vmem>>, vector<1x1x2x128xf32>
    %55 = vector.shape_cast %54 : vector<1x1x2x128xf32> to vector<2x128xf32>
    %c1_56 = arith.constant 1 : index
    %c3_57 = arith.constant 3 : index
    %c0_58 = arith.constant 0 : index
    %c0_59 = arith.constant 0 : index
    %56 = vector.load %arg3[%c1_56, %c3_57, %c0_58, %c0_59] : memref<2x4x2x128xf32, #tpu.memory_space<vmem>>, vector<1x1x2x128xf32>
    %57 = vector.shape_cast %56 : vector<1x1x2x128xf32> to vector<2x128xf32>
    %58 = arith.maximumf %43, %45 : vector<2x128xf32>
    %59 = arith.maximumf %58, %47 : vector<2x128xf32>
    %60 = arith.maximumf %59, %49 : vector<2x128xf32>
    %61 = arith.subf %43, %60 : vector<2x128xf32>
    %62 = math.exp %61 : vector<2x128xf32>
    %63 = arith.subf %45, %60 : vector<2x128xf32>
    %64 = math.exp %63 : vector<2x128xf32>
    %65 = arith.addf %62, %64 : vector<2x128xf32>
    %66 = arith.subf %47, %60 : vector<2x128xf32>
    %67 = math.exp %66 : vector<2x128xf32>
    %68 = arith.addf %65, %67 : vector<2x128xf32>
    %69 = arith.subf %49, %60 : vector<2x128xf32>
    %70 = math.exp %69 : vector<2x128xf32>
    %71 = arith.addf %68, %70 : vector<2x128xf32>
    %72 = math.log %71 : vector<2x128xf32>
    %73 = arith.addf %60, %72 : vector<2x128xf32>
    %74 = arith.mulf %51, %43 : vector<2x128xf32>
    %75 = arith.mulf %53, %45 : vector<2x128xf32>
    %76 = arith.addf %74, %75 : vector<2x128xf32>
    %77 = arith.mulf %55, %47 : vector<2x128xf32>
    %78 = arith.addf %76, %77 : vector<2x128xf32>
    %79 = arith.mulf %57, %49 : vector<2x128xf32>
    %80 = arith.addf %78, %79 : vector<2x128xf32>
    %81 = arith.subf %73, %80 : vector<2x128xf32>
    %cst_60 = arith.constant dense<0.000000e+00> : vector<128xf32>
    %82 = vector.multi_reduction <add>, %81, %cst_60 [0] : vector<2x128xf32> to vector<128xf32>
    %83 = vector.shape_cast %82 : vector<128xf32> to vector<1x128xf32>
    %84 = arith.addf %41, %83 : vector<1x128xf32>
    %c0_61 = arith.constant 0 : index
    %c0_62 = arith.constant 0 : index
    %c0_63 = arith.constant 0 : index
    %85 = vector.load %arg4[%c0_61, %c0_62, %c0_63] : memref<1x1x128xf32, #tpu.memory_space<vmem>>, vector<1x1x128xf32>
    %86 = vector.shape_cast %85 : vector<1x1x128xf32> to vector<1x128xf32>
    %87 = vector.shape_cast %84 : vector<1x128xf32> to vector<1x1x128xf32>
    tpu.vector_store %arg4[%c0_61, %c0_62, %c0_63], %87 {strides = array<i32>} : memref<1x1x128xf32, #tpu.memory_space<vmem>>, vector<1x1x128xf32>,
    return
  }
  func.func @transform_0(%arg0: i32, %arg1: i32) -> (i32, i32, i32, i32) {
    %c0_i32 = arith.constant 0 : i32
    %c0_i32_0 = arith.constant 0 : i32
    %c0_i32_1 = arith.constant 0 : i32
    return %arg0, %c0_i32, %arg1, %c0_i32_0 : i32, i32, i32, i32
  }
  func.func @transform_1(%arg0: i32, %arg1: i32) -> (i32, i32, i32, i32) {
    %c0_i32 = arith.constant 0 : i32
    %c0_i32_0 = arith.constant 0 : i32
    %c0_i32_1 = arith.constant 0 : i32
    return %arg0, %c0_i32, %arg1, %c0_i32_0 : i32, i32, i32, i32
  }
  func.func @transform_2(%arg0: i32, %arg1: i32) -> (i32, i32, i32) {
    %c0_i32 = arith.constant 0 : i32
    %c0_i32_0 = arith.constant 0 : i32
    return %arg0, %c0_i32, %arg1 : i32, i32, i32
  }
}

</mosaic_0001>

<llo_original>
// kernel: cross_entropy_loss_forward.1
$region0: #{cross_entropy_loss_forward.1}
  #allocation0 [shape = 'u32[]', space=smem, size = 0x4, offset = 0x4, fixed_abs, tag = 'smem constant byte address 0x4 - core index']
  #allocation1 [shape = 'u32[72,128]{1,0:T(1,128)}', space=vmem, size = 0x9000, scoped, tag = 'internal scratch']
  %s0 = inlined_call_operand.vmem [shape: f32[2,4,2,128], index: 0, kind: input, shape index: {}]
  %s1 = inlined_call_operand.vmem [shape: f32[2,4,2,128], index: 1, kind: input, shape index: {}]
  %s2 = inlined_call_operand.vmem [shape: f32[1,1,128], index: 2, kind: output, shape index: {}]
  %s3 = sld [smem:[#allocation0]]
  $region18: #{cross_entropy_loss_forward.1} parent=0
    _
  %s5 = ssub.s32 1, %s3
  %s6 = scalar_select 0, %s5, %s3
  // Predicated region
  $region2: #{cross_entropy_loss_forward.1} parent=0 // pred_check
    _
  $region3: #{cross_entropy_loss_forward.1} parent=0 // pred_check_branch
    %8 = sbr.rel (0) target = $region5
  $region4: #{cross_entropy_loss_forward.1} parent=0 // pred_region
    _
  $region5: #{cross_entropy_loss_forward.1} parent=0 // pred_fallthru
    _
  // Predicated region
  $region6: #{cross_entropy_loss_forward.1} parent=0 // pred_check
    _
  $region7: #{cross_entropy_loss_forward.1} parent=0 // pred_check_branch
    %10 = sbr.rel (0) target = $region9
  $region8: #{cross_entropy_loss_forward.1} parent=0 // pred_region
    _
  $region9: #{cross_entropy_loss_forward.1} parent=0 // pred_fallthru
    _
  %v11 = vld [vmem:[%s0] sm:$0x3]
  %s12 = scalar_lea.vmem %s0, 2
  %v13 = vld [vmem:[%s12] sm:$0x3]
  %s14 = scalar_lea.vmem %s0, 4
  %v15 = vld [vmem:[%s14] sm:$0x3]
  %s16 = scalar_lea.vmem %s0, 6
  %v17 = vld [vmem:[%s16] sm:$0x3]
  %v18 = vld [vmem:[%s1] sm:$0x3]
  %s19 = scalar_lea.vmem %s1, 2
  %v20 = vld [vmem:[%s19] sm:$0x3]
  %s21 = scalar_lea.vmem %s1, 4
  %v22 = vld [vmem:[%s21] sm:$0x3]
  %s23 = scalar_lea.vmem %s1, 6
  %v24 = vld [vmem:[%s23] sm:$0x3]
  %v25 = vmax.f32 %v11, %v13
  %v26 = vmax.f32 %v25, %v15
  %v27 = vmax.f32 %v26, %v17
  %v28 = vsub.f32 %v11, %v27
  %v29 = vmul.f32 %v28, 1.442695
  %v30 = vpow.pop %v29
  %v31 = vsub.f32 %v13, %v27
  %v32 = vmul.f32 %v31, 1.442695
  %v33 = vpow.pop %v32
  %v34 = vadd.f32 %v30, %v33
  %v35 = vsub.f32 %v15, %v27
  %v36 = vmul.f32 %v35, 1.442695
  %v37 = vpow.pop %v36
  %v38 = vadd.f32 %v34, %v37
  %v39 = vsub.f32 %v17, %v27
  %v40 = vmul.f32 %v39, 1.442695
  %v41 = vpow.pop %v40
  %v42 = vadd.f32 %v38, %v41
  %v43 = vlog2.pop %v42
  %v44 = vmul.f32 %v43, 0.6931472
  %v45 = vadd.f32 %v27, %v44
  %v46 = vmul.f32 %v18, %v11
  %v47 = vmul.f32 %v20, %v13
  %v48 = vadd.f32 %v46, %v47
  %v49 = vmul.f32 %v22, %v15
  %v50 = vadd.f32 %v48, %v49
  %v51 = vmul.f32 %v24, %v17
  %v52 = vadd.f32 %v50, %v51
  %v53 = vsub.f32 %v45, %v52
  %vm54 = vcmask 1041408
  %v55 = vsel %vm54, %v53, 0.0
  %v56 = vrot.slane %v55, 4
  %v57 = vadd.f32 %v55, %v56
  %v58 = vrot.slane %v57, 2
  %v59 = vadd.f32 %v57, %v58
  %v60 = vrot.slane %v59, 1
  %v61 = vadd.f32 %v59, %v60
  %s62 = scalar_lea.vmem %s0, 8
  %v63 = vld [vmem:[%s62] sm:$0x3]
  %s64 = scalar_lea.vmem %s0, 10
  %v65 = vld [vmem:[%s64] sm:$0x3]
  %s66 = scalar_lea.vmem %s0, 12
  %v67 = vld [vmem:[%s66] sm:$0x3]
  %s68 = scalar_lea.vmem %s0, 14
  %v69 = vld [vmem:[%s68] sm:$0x3]
  %s70 = scalar_lea.vmem %s1, 8
  %v71 = vld [vmem:[%s70] sm:$0x3]
  %s72 = scalar_lea.vmem %s1, 10
  %v73 = vld [vmem:[%s72] sm:$0x3]
  %s74 = scalar_lea.vmem %s1, 12
  %v75 = vld [vmem:[%s74] sm:$0x3]
  %s76 = scalar_lea.vmem %s1, 14
  %v77 = vld [vmem:[%s76] sm:$0x3]
  %v78 = vmax.f32 %v63, %v65
  %v79 = vmax.f32 %v78, %v67
  %v80 = vmax.f32 %v79, %v69
  %v81 = vsub.f32 %v63, %v80
  %v82 = vmul.f32 %v81, 1.442695
  %v83 = vpow.pop %v82
  %v84 = vsub.f32 %v65, %v80
  %v85 = vmul.f32 %v84, 1.442695
  %v86 = vpow.pop %v85
  %v87 = vadd.f32 %v83, %v86
  %v88 = vsub.f32 %v67, %v80
  %v89 = vmul.f32 %v88, 1.442695
  %v90 = vpow.pop %v89
  %v91 = vadd.f32 %v87, %v90
  %v92 = vsub.f32 %v69, %v80
  %v93 = vmul.f32 %v92, 1.442695
  %v94 = vpow.pop %v93
  %v95 = vadd.f32 %v91, %v94
  %v96 = vlog2.pop %v95
  %v97 = vmul.f32 %v96, 0.6931472
  %v98 = vadd.f32 %v80, %v97
  %v99 = vmul.f32 %v71, %v63
  %v100 = vmul.f32 %v73, %v65
  %v101 = vadd.f32 %v99, %v100
  %v102 = vmul.f32 %v75, %v67
  %v103 = vadd.f32 %v101, %v102
  %v104 = vmul.f32 %v77, %v69
  %v105 = vadd.f32 %v103, %v104
  %v106 = vsub.f32 %v98, %v105
  %v107 = vsel %vm54, %v106, 0.0
  %v108 = vrot.slane %v107, 4
  %v109 = vadd.f32 %v107, %v108
  %v110 = vrot.slane %v109, 2
  %v111 = vadd.f32 %v109, %v110
  %v112 = vrot.slane %v111, 1
  %v113 = vadd.f32 %v111, %v112
  %v114 = vadd.f32 %v61, %v113
  %115 = vst [vmem:[%s2] sm:$0x1] %v114
  // Predicated region
  $region10: #{cross_entropy_loss_forward.1} parent=0 // pred_check
    _
  $region11: #{cross_entropy_loss_forward.1} parent=0 // pred_check_branch
    %117 = sbr.rel (0) target = $region13
  $region12: #{cross_entropy_loss_forward.1} parent=0 // pred_region
    _
  $region13: #{cross_entropy_loss_forward.1} parent=0 // pred_fallthru
    _
  // Predicated region
  $region14: #{cross_entropy_loss_forward.1} parent=0 // pred_check
    _
  $region15: #{cross_entropy_loss_forward.1} parent=0 // pred_check_branch
    %119 = sbr.rel (0) target = $region17
  $region16: #{cross_entropy_loss_forward.1} parent=0 // pred_region
    _
  $region17: #{cross_entropy_loss_forward.1} parent=0 // pred_fallthru
    _

</llo_original>
